<compile_context>
chip_gen: v7x
topology: tpu7x:2x2x1
jax: 0.10.0
libtpu: 0.0.40
codegen_flags: <defaults>
</compile_context>

<pallas_src>
import numpy as np
import jax
import jax.numpy as jnp
from jax.experimental import pallas as pl
from jax.experimental.pallas import tpu as pltpu

D_MODEL = 32
N_FEAT = 4
CLIP = 5.0          # InputNorm cliprange
IN_EPS = 1e-5
LN_EPS = 1e-5
MAX_Q_TILE = 2048   # folded rows per grid step (= 2048*4 = 8192 entities/step)
ROW_ALIGN = 16      # sublane alignment for the row tile (safe for f32 & bf16)


def _round_up(x: int, m: int) -> int:
    return ((x + m - 1) // m) * m


def _num_tensorcores_per_chip() -> int:
    """2 TensorCores per chip on v7x, 1 on v5e/v6e (best-effort detection)."""
    try:
        kind = jax.devices()[0].device_kind.lower()
        if "v7" in kind:
            return 2
    except Exception:
        pass
    return 1


def _entity_embed_kernel(xf_ref, scale_ref, shift_ref, wbd_ref, b_ref,
                         g_ref, beta_ref, lnmat_ref, o_ref):
    """Fused InputNorm(affine+clip) -> block-diag Linear -> ReLU -> LayerNorm.

    `fold` entities are packed per folded row.  The block-diagonal weight
    performs all `fold` independent Linear layers in a single MXU matmul and
    directly produces the 128-lane output layout (no lane concatenates, no
    single-lane column broadcasts).  LayerNorm mean/variance per 32-lane
    segment are computed with two more MXU matmuls against a block-diagonal
    averaging matrix, keeping the XLU idle; rsqrt goes to the EUP.
    """
    # InputNorm pre-folded into affine: xn = clip(x * scale + shift, +-CLIP).
    xn = jnp.clip(xf_ref[...] * scale_ref[...] + shift_ref[...], -CLIP, CLIP)
    # All `fold` Linear layers at once: (Q, fold*f) @ (fold*f, fold*d).
    h = jnp.dot(xn, wbd_ref[...], preferred_element_type=jnp.float32) + b_ref[...]
    h = jnp.maximum(h, 0.0)                                   # ReLU
    # Per-segment mean, broadcast back across its d lanes by the avg matrix.
    mu = jnp.dot(h, lnmat_ref[...], preferred_element_type=jnp.float32)
    c = h - mu
    var = jnp.dot(c * c, lnmat_ref[...], preferred_element_type=jnp.float32)
    y = c * jax.lax.rsqrt(var + LN_EPS) * g_ref[...] + beta_ref[...]
    # Full-lane (Q, fold*d = 128) store -> unmasked vst + dense DMA writeback.
    o_ref[...] = y.astype(o_ref.dtype)


def entity_embed(x, in_mean, in_var, w, b, gamma, beta,
                 out_dtype=jnp.float32):
    """Fused InputNorm -> Linear -> ReLU -> LayerNorm for one entity type.

    x: (n, f) float32;  returns (n, d) `out_dtype`.
    All accumulation / LN statistics stay in f32; only the final store is cast
    (pass out_dtype=jnp.bfloat16 to halve HBM writeback on the write-bound
    roofline).
    """
    n, f = x.shape
    d = w.shape[1]
    # Pack `fold` entities per row so the output tile is 128 lanes wide.
    # fold == 1 (d does not divide 128) is a correctness-only fallback: output
    # lanes < 128 -> masked partial stores (perf cliff).
    fold = (128 // d) if (d < 128 and 128 % d == 0) else 1

    # Pre-fold InputNorm into an affine (clip stays inside the kernel).
    scale = jax.lax.rsqrt(in_var + IN_EPS)        # (1, f)
    shift = -in_mean * scale                      # (1, f)
    scale_f = jnp.tile(scale, (1, fold))          # (1, fold*f)
    shift_f = jnp.tile(shift, (1, fold))          # (1, fold*f)

    # Block-diagonal Linear weight and LN averaging matrix (built once in the
    # wrapper) so the kernel does 3 MXU matmuls instead of XLU lane traffic.
    eye_fold = jnp.eye(fold, dtype=jnp.float32)
    w_bd = jnp.kron(eye_fold, w.astype(jnp.float32))                     # (fold*f, fold*d)
    ln_mat = jnp.kron(eye_fold, jnp.full((d, d), 1.0 / d, jnp.float32))  # (fold*d, fold*d)
    b_t = jnp.tile(b, (1, fold))                  # (1, fold*d)
    gamma_t = jnp.tile(gamma, (1, fold))          # (1, fold*d)
    beta_t = jnp.tile(beta, (1, fold))            # (1, fold*d)

    # Generation-aware tile selection: big tiles to amortize the ~0.35us/step
    # pipeline overhead; single-TC chips (v5e/v6e) never force a split, 2-TC
    # chips (v7x) keep an even "parallel" step count for core balance.
    q_total = max(1, pl.cdiv(n, fold))
    n_tc = _num_tensorcores_per_chip()
    if n_tc >= 2 and q_total > 2 * ROW_ALIGN:
        steps = max(2, pl.cdiv(q_total, MAX_Q_TILE))
        steps += steps % 2                                  # even step count
        q_tile = min(MAX_Q_TILE, _round_up(pl.cdiv(q_total, steps), ROW_ALIGN))
        steps = pl.cdiv(q_total, q_tile)
        if steps > 1:
            steps += steps % 2
    else:
        q_tile = min(MAX_Q_TILE, _round_up(q_total, ROW_ALIGN))
        steps = pl.cdiv(q_total, q_tile)
    q_pad = q_tile * steps
    n_pad = q_pad * fold

    # Single fused pad, then a free contiguous reshape to the folded layout.
    # TODO(synk): optionally fold 32 entities/row (input 128 lanes wide) to cut
    # vld slot pressure; second-order since input traffic is only 16 B/entity.
    x_p = jnp.pad(x, ((0, n_pad - n), (0, 0)))
    x_f = x_p.reshape(q_pad, fold * f)

    out = pl.pallas_call(
        _entity_embed_kernel,
        out_shape=jax.ShapeDtypeStruct((q_pad, fold * d), out_dtype),
        grid_spec=pltpu.PrefetchScalarGridSpec(
            num_scalar_prefetch=0,
            grid=(steps,),
            in_specs=[
                pl.BlockSpec((q_tile, fold * f), lambda i: (i, 0)),   # folded rows
                pl.BlockSpec((1, fold * f), lambda i: (0, 0)),        # affine scale
                pl.BlockSpec((1, fold * f), lambda i: (0, 0)),        # affine shift
                pl.BlockSpec((fold * f, fold * d), lambda i: (0, 0)), # block-diag W
                pl.BlockSpec((1, fold * d), lambda i: (0, 0)),        # bias (tiled)
                pl.BlockSpec((1, fold * d), lambda i: (0, 0)),        # LN gamma (tiled)
                pl.BlockSpec((1, fold * d), lambda i: (0, 0)),        # LN beta (tiled)
                pl.BlockSpec((fold * d, fold * d), lambda i: (0, 0)), # LN avg matrix
            ],
            out_specs=pl.BlockSpec((q_tile, fold * d), lambda i: (i, 0)),
        ),
        compiler_params=pltpu.CompilerParams(dimension_semantics=("parallel",)),
    )(x_f, scale_f, shift_f, w_bd, b_t, gamma_t, beta_t, ln_mat)

    # Un-fold is a free contiguous reshape: (q_pad, fold*d) -> (n_pad, d).
    return out.reshape(n_pad, d)[:n]


def _ref_embed(x, in_mean, in_var, w, b, gamma, beta):
    xn = jnp.clip((x - in_mean) * jax.lax.rsqrt(in_var + IN_EPS), -CLIP, CLIP)
    h = jnp.maximum(xn @ w + b, 0.0)
    mu = h.mean(-1, keepdims=True)
    var = ((h - mu) ** 2).mean(-1, keepdims=True)
    return (h - mu) * jax.lax.rsqrt(var + LN_EPS) * gamma + beta


if __name__ == "__main__":
    key = jax.random.PRNGKey(0)
    k1, k2, k3, k4, k5, k6, k7 = jax.random.split(key, 7)

    # Deterministic parameters for the "unit" (featured) embedding branch.
    in_mean = jax.random.normal(k1, (1, N_FEAT), jnp.float32)
    in_var = jax.nn.softplus(jax.random.normal(k2, (1, N_FEAT), jnp.float32)) + 0.5
    w = jax.random.normal(k3, (N_FEAT, D_MODEL), jnp.float32) / np.sqrt(N_FEAT)
    b = 0.1 * jax.random.normal(k4, (1, D_MODEL), jnp.float32)
    gamma = jnp.ones((1, D_MODEL), jnp.float32)
    beta = jnp.zeros((1, D_MODEL), jnp.float32)
    # FeaturelessEmbedding parameter for the "flag" entity type.
    flag_embedding = jax.random.normal(k5, (1, D_MODEL), jnp.float32)

    # Ragged observation: batch of 2 samples.
    #   "unit" counts per sample: [3, 2]   (4 features each)
    #   "flag" counts per sample: [1, 2]   (featureless)
    unit_counts = np.array([3, 2], dtype=np.int32)
    flag_counts = np.array([1, 2], dtype=np.int32)
    n_unit = int(unit_counts.sum())
    n_flag = int(flag_counts.sum())
    unit_feats = jax.random.normal(k6, (n_unit, N_FEAT), jnp.float32)

    # --- embedding hot path (Pallas kernel) ---
    # TODO(synk): with several featured entity types, fuse them into one
    # pallas_call via scalar-prefetched per-type row offsets / parameter
    # indices (grouped-GEMM style) to amortize per-launch dispatch overhead.
    unit_emb = entity_embed(unit_feats, in_mean, in_var, w, b, gamma, beta)
    # Featureless branch: embedding.repeat(n, 1).
    flag_emb = jnp.broadcast_to(flag_embedding, (n_flag, D_MODEL))

    # --- concat + entity-type column (mirrors torch.cat / torch.full) ---
    x = jnp.concatenate([unit_emb, flag_emb], axis=0)
    entity_type = jnp.concatenate(
        [jnp.full((n_unit, 1), 0.0, jnp.float32),
         jnp.full((n_flag, 1), 1.0, jnp.float32)], axis=0)

    # --- ragged metadata (numpy glue, mirrors RaggedBuffer bookkeeping) ---
    batch_index = np.concatenate(
        [np.repeat(np.arange(len(unit_counts)), unit_counts),
         np.repeat(np.arange(len(flag_counts)), flag_counts)]).astype(np.int32)
    index_offsets = {"unit": 0, "flag": n_unit}
    unit_flat = np.arange(n_unit) + index_offsets["unit"]
    flag_flat = np.arange(n_flag) + index_offsets["flag"]
    index_map_parts = []
    u0 = f0 = 0
    for s in range(len(unit_counts)):
        index_map_parts.append(unit_flat[u0:u0 + unit_counts[s]])
        index_map_parts.append(flag_flat[f0:f0 + flag_counts[s]])
        u0 += unit_counts[s]
        f0 += flag_counts[s]
    index_map = np.concatenate(index_map_parts).astype(np.int32)
    lengths = (unit_counts + flag_counts).astype(np.int32)
    # TODO(synk): original returns RaggedBufferI64 objects; here indices are
    # plain int32 arrays (no ragged_buffer library on device).

    # --- final permutation by index_map (gather, plain JAX glue) ---
    idx = jnp.asarray(index_map)
    x_out = jnp.take(x, idx, axis=0)
    entity_types_out = jnp.take(entity_type, idx, axis=0)
    batch_index_out = jnp.take(jnp.asarray(batch_index), idx, axis=0)
    lengths_out = jnp.asarray(lengths)
    tentities = {"unit": unit_feats, "flag": jnp.zeros((n_flag, 0), jnp.float32)}

    # Validate the kernel against a pure-JAX reference of the embedding branch.
    ref = _ref_embed(unit_feats, in_mean, in_var, w, b, gamma, beta)
    jax.block_until_ready((x_out, batch_index_out, entity_types_out, lengths_out))
    np.testing.assert_allclose(np.asarray(unit_emb), np.asarray(ref),
                               rtol=1e-4, atol=1e-4)
    assert x_out.shape == (n_unit + n_flag, D_MODEL)
    assert entity_types_out.shape == (n_unit + n_flag, 1)
    assert bool(jnp.all(jnp.isfinite(x_out)))

    # Larger-n check: exercises the multi-step tiled grid path.
    big_feats = jax.random.normal(k7, (10000, N_FEAT), jnp.float32)
    big_emb = entity_embed(big_feats, in_mean, in_var, w, b, gamma, beta)
    big_ref = _ref_embed(big_feats, in_mean, in_var, w, b, gamma, beta)
    np.testing.assert_allclose(np.asarray(big_emb), np.asarray(big_ref),
                               rtol=1e-4, atol=1e-4)

    # bf16-writeback path (f32 accumulation, cast only at the store).
    bf16_emb = entity_embed(unit_feats, in_mean, in_var, w, b, gamma, beta,
                            out_dtype=jnp.bfloat16)
    np.testing.assert_allclose(np.asarray(bf16_emb).astype(np.float32),
                               np.asarray(ref), rtol=2e-2, atol=5e-2)
    jax.block_until_ready((big_emb, bf16_emb))

    print("KERNEL_OK")
</pallas_src>

<mosaic_0001>
module attributes {stable_mosaic.version = 11 : i64} {
  func.func @_entity_embed_kernel(%arg0: i32, %arg1: memref<16x16xf32, #tpu.memory_space<vmem>>, %arg2: memref<1x16xf32, #tpu.memory_space<vmem>>, %arg3: memref<1x16xf32, #tpu.memory_space<vmem>>, %arg4: memref<16x128xf32, #tpu.memory_space<vmem>>, %arg5: memref<1x128xf32, #tpu.memory_space<vmem>>, %arg6: memref<1x128xf32, #tpu.memory_space<vmem>>, %arg7: memref<1x128xf32, #tpu.memory_space<vmem>>, %arg8: memref<128x128xf32, #tpu.memory_space<vmem>>, %arg9: memref<16x128xf32, #tpu.memory_space<vmem>>) attributes {dimension_semantics = [#tpu.dimension_semantics<parallel>], iteration_bounds = array<i64: 1>, scalar_prefetch = 0 : i64, scratch_operands = 0 : i64, tpu.core_type = #tpu.core_type<tc>, window_params = [{transform_indices = @transform_0, window_bounds = array<i64: 16, 16>}, {pipeline_mode = #tpu.pipeline_mode<synchronous>, transform_indices = @transform_1, window_bounds = array<i64: 1, 16>}, {pipeline_mode = #tpu.pipeline_mode<synchronous>, transform_indices = @transform_2, window_bounds = array<i64: 1, 16>}, {pipeline_mode = #tpu.pipeline_mode<synchronous>, transform_indices = @transform_3, window_bounds = array<i64: 16, 128>}, {pipeline_mode = #tpu.pipeline_mode<synchronous>, transform_indices = @transform_4, window_bounds = array<i64: 1, 128>}, {pipeline_mode = #tpu.pipeline_mode<synchronous>, transform_indices = @transform_5, window_bounds = array<i64: 1, 128>}, {pipeline_mode = #tpu.pipeline_mode<synchronous>, transform_indices = @transform_6, window_bounds = array<i64: 1, 128>}, {pipeline_mode = #tpu.pipeline_mode<synchronous>, transform_indices = @transform_7, window_bounds = array<i64: 128, 128>}, {transform_indices = @transform_8, window_bounds = array<i64: 16, 128>}]} {
    %c0 = arith.constant 0 : index
    %c0_0 = arith.constant 0 : index
    %0 = vector.load %arg1[%c0, %c0_0] : memref<16x16xf32, #tpu.memory_space<vmem>>, vector<16x16xf32>
    %c0_1 = arith.constant 0 : index
    %c0_2 = arith.constant 0 : index
    %1 = vector.load %arg2[%c0_1, %c0_2] : memref<1x16xf32, #tpu.memory_space<vmem>>, vector<1x16xf32>
    %2 = vector.broadcast %1 : vector<1x16xf32> to vector<16x16xf32>
    %3 = arith.mulf %0, %2 : vector<16x16xf32>
    %c0_3 = arith.constant 0 : index
    %c0_4 = arith.constant 0 : index
    %4 = vector.load %arg3[%c0_3, %c0_4] : memref<1x16xf32, #tpu.memory_space<vmem>>, vector<1x16xf32>
    %5 = vector.broadcast %4 : vector<1x16xf32> to vector<16x16xf32>
    %6 = arith.addf %3, %5 : vector<16x16xf32>
    %cst = arith.constant -5.000000e+00 : f32
    %cst_5 = arith.constant 5.000000e+00 : f32
    %7 = vector.broadcast %cst : f32 to vector<16x16xf32>
    %8 = arith.maximumf %7, %6 : vector<16x16xf32>
    %9 = vector.broadcast %cst_5 : f32 to vector<16x16xf32>
    %10 = arith.minimumf %9, %8 : vector<16x16xf32>
    %c0_6 = arith.constant 0 : index
    %c0_7 = arith.constant 0 : index
    %11 = vector.load %arg4[%c0_6, %c0_7] : memref<16x128xf32, #tpu.memory_space<vmem>>, vector<16x128xf32>
    %cst_8 = arith.constant dense<0.000000e+00> : vector<16x128xf32>
    %12 = tpu.matmul %10, %11, %cst_8 {dimension_numbers = #tpu.dot_dimension_numbers<[1], [0], [0], [1], [0, 0, 1, 1], [], []>} : vector<16x16xf32>, vector<16x128xf32>, vector<16x128xf32> -> vector<16x128xf32>
    %c0_9 = arith.constant 0 : index
    %c0_10 = arith.constant 0 : index
    %13 = vector.load %arg5[%c0_9, %c0_10] : memref<1x128xf32, #tpu.memory_space<vmem>>, vector<1x128xf32>
    %14 = vector.broadcast %13 : vector<1x128xf32> to vector<16x128xf32>
    %15 = arith.addf %12, %14 : vector<16x128xf32>
    %cst_11 = arith.constant 0.000000e+00 : f32
    %16 = vector.broadcast %cst_11 : f32 to vector<16x128xf32>
    %17 = arith.maximumf %15, %16 : vector<16x128xf32>
    %c0_12 = arith.constant 0 : index
    %c0_13 = arith.constant 0 : index
    %18 = vector.load %arg8[%c0_12, %c0_13] : memref<128x128xf32, #tpu.memory_space<vmem>>, vector<128x128xf32>
    %cst_14 = arith.constant dense<0.000000e+00> : vector<16x128xf32>
    %19 = tpu.matmul %17, %18, %cst_14 {dimension_numbers = #tpu.dot_dimension_numbers<[1], [0], [0], [1], [0, 0, 1, 1], [], []>} : vector<16x128xf32>, vector<128x128xf32>, vector<16x128xf32> -> vector<16x128xf32>
    %20 = arith.subf %17, %19 : vector<16x128xf32>
    %21 = arith.mulf %20, %20 : vector<16x128xf32>
    %c0_15 = arith.constant 0 : index
    %c0_16 = arith.constant 0 : index
    %22 = vector.load %arg8[%c0_15, %c0_16] : memref<128x128xf32, #tpu.memory_space<vmem>>, vector<128x128xf32>
    %cst_17 = arith.constant dense<0.000000e+00> : vector<16x128xf32>
    %23 = tpu.matmul %21, %22, %cst_17 {dimension_numbers = #tpu.dot_dimension_numbers<[1], [0], [0], [1], [0, 0, 1, 1], [], []>} : vector<16x128xf32>, vector<128x128xf32>, vector<16x128xf32> -> vector<16x128xf32>
    %cst_18 = arith.constant 9.99999974E-6 : f32
    %24 = vector.broadcast %cst_18 : f32 to vector<16x128xf32>
    %25 = arith.addf %23, %24 : vector<16x128xf32>
    %26 = math.rsqrt %25 : vector<16x128xf32>
    %27 = arith.mulf %20, %26 : vector<16x128xf32>
    %c0_19 = arith.constant 0 : index
    %c0_20 = arith.constant 0 : index
    %28 = vector.load %arg6[%c0_19, %c0_20] : memref<1x128xf32, #tpu.memory_space<vmem>>, vector<1x128xf32>
    %29 = vector.broadcast %28 : vector<1x128xf32> to vector<16x128xf32>
    %30 = arith.mulf %27, %29 : vector<16x128xf32>
    %c0_21 = arith.constant 0 : index
    %c0_22 = arith.constant 0 : index
    %31 = vector.load %arg7[%c0_21, %c0_22] : memref<1x128xf32, #tpu.memory_space<vmem>>, vector<1x128xf32>
    %32 = vector.broadcast %31 : vector<1x128xf32> to vector<16x128xf32>
    %33 = arith.addf %30, %32 : vector<16x128xf32>
    %c0_23 = arith.constant 0 : index
    %c0_24 = arith.constant 0 : index
    %34 = vector.load %arg9[%c0_23, %c0_24] : memref<16x128xf32, #tpu.memory_space<vmem>>, vector<16x128xf32>
    tpu.vector_store %arg9[%c0_23, %c0_24], %33 {strides = array<i32>} : memref<16x128xf32, #tpu.memory_space<vmem>>, vector<16x128xf32>,
    return
  }
  func.func @transform_0(%arg0: i32) -> (i32, i32) {
    %c0_i32 = arith.constant 0 : i32
    %c0_i32_0 = arith.constant 0 : i32
    return %arg0, %c0_i32 : i32, i32
  }
  func.func @transform_1(%arg0: i32) -> (i32, i32) {
    %c0_i32 = arith.constant 0 : i32
    %c0_i32_0 = arith.constant 0 : i32
    %c0_i32_1 = arith.constant 0 : i32
    return %c0_i32, %c0_i32_0 : i32, i32
  }
  func.func @transform_2(%arg0: i32) -> (i32, i32) {
    %c0_i32 = arith.constant 0 : i32
    %c0_i32_0 = arith.constant 0 : i32
    %c0_i32_1 = arith.constant 0 : i32
    return %c0_i32, %c0_i32_0 : i32, i32
  }
  func.func @transform_3(%arg0: i32) -> (i32, i32) {
    %c0_i32 = arith.constant 0 : i32
    %c0_i32_0 = arith.constant 0 : i32
    %c0_i32_1 = arith.constant 0 : i32
    return %c0_i32, %c0_i32_0 : i32, i32
  }
  func.func @transform_4(%arg0: i32) -> (i32, i32) {
    %c0_i32 = arith.constant 0 : i32
    %c0_i32_0 = arith.constant 0 : i32
    %c0_i32_1 = arith.constant 0 : i32
    return %c0_i32, %c0_i32_0 : i32, i32
  }
  func.func @transform_5(%arg0: i32) -> (i32, i32) {
    %c0_i32 = arith.constant 0 : i32
    %c0_i32_0 = arith.constant 0 : i32
    %c0_i32_1 = arith.constant 0 : i32
    return %c0_i32, %c0_i32_0 : i32, i32
  }
  func.func @transform_6(%arg0: i32) -> (i32, i32) {
    %c0_i32 = arith.constant 0 : i32
    %c0_i32_0 = arith.constant 0 : i32
    %c0_i32_1 = arith.constant 0 : i32
    return %c0_i32, %c0_i32_0 : i32, i32
  }
  func.func @transform_7(%arg0: i32) -> (i32, i32) {
    %c0_i32 = arith.constant 0 : i32
    %c0_i32_0 = arith.constant 0 : i32
    %c0_i32_1 = arith.constant 0 : i32
    return %c0_i32, %c0_i32_0 : i32, i32
  }
  func.func @transform_8(%arg0: i32) -> (i32, i32) {
    %c0_i32 = arith.constant 0 : i32
    %c0_i32_0 = arith.constant 0 : i32
    return %arg0, %c0_i32 : i32, i32
  }
}

</mosaic_0001>

<llo_original>
// kernel: tpu_custom_call.1
$region0: #{tpu_custom_call.1}
  #allocation0 [shape = 'u32[]', space=smem, size = 0x4, offset = 0x4, fixed_abs, tag = 'smem constant byte address 0x4 - core index']
  #allocation1 [shape = 'u32[144,128]{1,0:T(1,128)}', space=vmem, size = 0x12000, scoped, tag = 'internal scratch']
  %s0 = inlined_call_operand.hbm [shape: f32[16,16], index: 0, kind: input, shape index: {}]
  %s1 = inlined_call_operand.vmem [shape: f32[1,16], index: 1, kind: input, shape index: {}]
  %s2 = inlined_call_operand.vmem [shape: f32[1,16], index: 2, kind: input, shape index: {}]
  %s3 = inlined_call_operand.hbm [shape: f32[16,128], index: 3, kind: input, shape index: {}]
  %s4 = inlined_call_operand.vmem [shape: f32[1,128], index: 4, kind: input, shape index: {}]
  %s5 = inlined_call_operand.vmem [shape: f32[1,128], index: 5, kind: input, shape index: {}]
  %s6 = inlined_call_operand.vmem [shape: f32[1,128], index: 6, kind: input, shape index: {}]
  %s7 = inlined_call_operand.hbm [shape: f32[128,128], index: 7, kind: input, shape index: {}]
  %s8 = inlined_call_operand.hbm [shape: f32[16,128], index: 8, kind: output, shape index: {}]
  %s9 = sld [smem:[#allocation0]]
  $region54: #{tpu_custom_call.1} parent=0
    _
  %s11 = ssub.s32 1, %s9
  %s12 = scalar_select 0, %s11, %s9
  $region1: #{tpu_custom_call.1} parent=0
    #allocation2 [shape = 'u8[8192]{0}', space=vmem, size = 0x2000, scoped, tag = 'input window, operand 0, single buffered']
    #allocation3 [shape = 's32[1]{0}', space=sflag, size = 0x4, scoped, tag = 'scoped memory for tpu_custom_call.1']
    #allocation4 [shape = 's32[1]{0}', space=sflag, size = 0x4, scoped, tag = 'scoped memory for tpu_custom_call.1']
    #allocation5 [shape = 'u8[8192]{0}', space=vmem, size = 0x2000, scoped, tag = 'input window, operand 3, single buffered']
    #allocation6 [shape = 's32[1]{0}', space=sflag, size = 0x4, scoped, tag = 'scoped memory for tpu_custom_call.1']
    #allocation7 [shape = 'u8[65536]{0}', space=vmem, size = 0x10000, scoped, tag = 'input window, operand 7, single buffered']
    #allocation8 [shape = 'u8[8192]{0}', space=vmem, size = 0x2000, scoped, tag = 'output window, operand 0, single buffered']
    %13 = vsyncpa [#allocation3], 0
    %14 = vsyncpa [#allocation6], 0
    %15 = vsyncpa [#allocation4], 0
    // Predicated region
    $region2: #{tpu_custom_call.1} parent=1 // pred_check
      _
    $region3: #{tpu_custom_call.1} parent=1 // pred_check_branch
      %17 = sbr.rel (0) target = $region5
    $region4: #{tpu_custom_call.1} parent=1 // pred_region
      %s19 = ssub.s32 256, 256
      %20 = vsyncadd [#allocation3], %s19
      %s21 = sshll.u32 [#allocation2], 4
      %s22 = int_to_ptr.vmem [resolvable:$true] %s21
      %27 = dma.hbm_to_vmem [thread:$0]  %s0, 256, %s22, [#allocation3], 128, 128, 8
    $region5: #{tpu_custom_call.1} parent=1 // pred_fallthru
      _
    // Predicated region
    $region6: #{tpu_custom_call.1} parent=1 // pred_check
      _
    $region7: #{tpu_custom_call.1} parent=1 // pred_check_branch
      %29 = sbr.rel (0) target = $region9
    $region8: #{tpu_custom_call.1} parent=1 // pred_region
      _
    $region9: #{tpu_custom_call.1} parent=1 // pred_fallthru
      _
    // Predicated region
    $region10: #{tpu_custom_call.1} parent=1 // pred_check
      _
    $region11: #{tpu_custom_call.1} parent=1 // pred_check_branch
      %31 = sbr.rel (0) target = $region13
    $region12: #{tpu_custom_call.1} parent=1 // pred_region
      _
    $region13: #{tpu_custom_call.1} parent=1 // pred_fallthru
      _
    // Predicated region
    $region14: #{tpu_custom_call.1} parent=1 // pred_check
      _
    $region15: #{tpu_custom_call.1} parent=1 // pred_check_branch
      %33 = sbr.rel (0) target = $region17
    $region16: #{tpu_custom_call.1} parent=1 // pred_region
      %s35 = ssub.s32 256, 256
      %36 = vsyncadd [#allocation6], %s35
      %s37 = sshll.u32 [#allocation5], 4
      %s38 = int_to_ptr.vmem [resolvable:$true] %s37
      %43 = dma.hbm_to_vmem [thread:$0]  %s3, 256, %s38, [#allocation6], 128, 128, 8
    $region17: #{tpu_custom_call.1} parent=1 // pred_fallthru
      _
    // Predicated region
    $region18: #{tpu_custom_call.1} parent=1 // pred_check
      _
    $region19: #{tpu_custom_call.1} parent=1 // pred_check_branch
      %45 = sbr.rel (0) target = $region21
    $region20: #{tpu_custom_call.1} parent=1 // pred_region
      _
    $region21: #{tpu_custom_call.1} parent=1 // pred_fallthru
      _
    // Predicated region
    $region22: #{tpu_custom_call.1} parent=1 // pred_check
      _
    $region23: #{tpu_custom_call.1} parent=1 // pred_check_branch
      %47 = sbr.rel (0) target = $region25
    $region24: #{tpu_custom_call.1} parent=1 // pred_region
      _
    $region25: #{tpu_custom_call.1} parent=1 // pred_fallthru
      _
    // Predicated region
    $region26: #{tpu_custom_call.1} parent=1 // pred_check
      _
    $region27: #{tpu_custom_call.1} parent=1 // pred_check_branch
      %49 = sbr.rel (0) target = $region29
    $region28: #{tpu_custom_call.1} parent=1 // pred_region
      _
    $region29: #{tpu_custom_call.1} parent=1 // pred_fallthru
      _
    // Predicated region
    $region30: #{tpu_custom_call.1} parent=1 // pred_check
      _
    $region31: #{tpu_custom_call.1} parent=1 // pred_check_branch
      %51 = sbr.rel (0) target = $region33
    $region32: #{tpu_custom_call.1} parent=1 // pred_region
      %s53 = ssub.s32 2048, 2048
      %54 = vsyncadd [#allocation6], %s53
      %s55 = sshll.u32 [#allocation7], 4
      %s56 = int_to_ptr.vmem [resolvable:$true] %s55
      %61 = dma.hbm_to_vmem [thread:$0]  %s7, 2048, %s56, [#allocation6], 128, 128, 8
    $region33: #{tpu_custom_call.1} parent=1 // pred_fallthru
      _
    // Predicated region
    $region34: #{tpu_custom_call.1} parent=1 // pred_check
      _
    $region35: #{tpu_custom_call.1} parent=1 // pred_check_branch
      %63 = sbr.rel (0) target = $region37
    $region36: #{tpu_custom_call.1} parent=1 // pred_region
      %64 = dma.done [#allocation3], 256
    $region37: #{tpu_custom_call.1} parent=1 // pred_fallthru
      _
    // Predicated region
    $region38: #{tpu_custom_call.1} parent=1 // pred_check
      _
    $region39: #{tpu_custom_call.1} parent=1 // pred_check_branch
      %66 = sbr.rel (0) target = $region41
    $region40: #{tpu_custom_call.1} parent=1 // pred_region
      %67 = dma.done [#allocation6], 256
    $region41: #{tpu_custom_call.1} parent=1 // pred_fallthru
      _
    // Predicated region
    $region42: #{tpu_custom_call.1} parent=1 // pred_check
      _
    $region43: #{tpu_custom_call.1} parent=1 // pred_check_branch
      %69 = sbr.rel (0) target = $region45
    $region44: #{tpu_custom_call.1} parent=1 // pred_region
      %70 = dma.done [#allocation6], 2048
    $region45: #{tpu_custom_call.1} parent=1 // pred_fallthru
      _
    %v71 = vld [vmem:[#allocation2] sm:$0xff]
    %v72 = vld [vmem:[#allocation2 + $0x8] sm:$0xff]
    %v73 = vld [vmem:[%s1] sm:$0x1]
    %v75 = vlaneseq
    %v76 = vshrl.u32 %v75, 7
    %v77 = vsub.s32 0, %v76
    %v78 = vrot.slane %v73, %v77
    %v80 = vmul.f32 %v71, %v78
    %v81 = vmul.f32 %v72, %v78
    %v82 = vld [vmem:[%s2] sm:$0x1]
    %v84 = vlaneseq
    %v85 = vshrl.u32 %v84, 7
    %v86 = vsub.s32 0, %v85
    %v87 = vrot.slane %v82, %v86
    %v89 = vadd.f32 %v80, %v87
    %v90 = vadd.f32 %v81, %v87
    %v91 = vmax.f32 %v89, -5.0
    %v92 = vmax.f32 %v90, -5.0
    %v93 = vmin.f32 %v91, 5.0
    %v94 = vmin.f32 %v92, 5.0
    %v95 = vld [vmem:[#allocation5] sm:$0xff]
    %v96 = vld [vmem:[#allocation5 + $0x8] sm:$0xff]
    %v97 = vld [vmem:[%s4] sm:$0x1]
    %v99 = vlaneseq
    %v100 = vshrl.u32 %v99, 7
    %v101 = vsub.s32 0, %v100
    %v102 = vrot.slane %v97, %v101
    %vm104 = vcmask 130048
    %v106 = vsel %vm104, %v93, 0
    %v109 = vsel %vm104, %v94, 0
    %111 = vmatprep.subr.mxu0 0.0
    %112 = vmatpush1.msra.mxu0 %v95
    %113 = vmatprep.subr.mxu0 0.0
    %114 = vmatpush1.msra.mxu0 %v96
    %115 = vmatprep.subr.mxu0 0.0
    %116 = vmatpush1.msra.mxu0 0.0
    %117 = vmatprep.subr.mxu0 0.0
    %118 = vmatpush1.msra.mxu0 0.0
    %119 = vmatprep.subr.mxu0 0.0
    %120 = vmatpush1.msra.mxu0 0.0
    %121 = vmatprep.subr.mxu0 0.0
    %122 = vmatpush1.msra.mxu0 0.0
    %123 = vmatprep.subr.mxu0 0.0
    %124 = vmatpush1.msra.mxu0 0.0
    %125 = vmatprep.subr.mxu0 0.0
    %126 = vmatpush1.msra.mxu0 0.0
    %127 = vmatprep.subr.mxu0 0.0
    %128 = vmatpush1.msra.mxu0 0.0
    %129 = vmatprep.subr.mxu0 0.0
    %130 = vmatpush1.msra.mxu0 0.0
    %131 = vmatprep.subr.mxu0 0.0
    %132 = vmatpush1.msra.mxu0 0.0
    %133 = vmatprep.subr.mxu0 0.0
    %134 = vmatpush1.msra.mxu0 0.0
    %135 = vmatprep.subr.mxu0 0.0
    %136 = vmatpush1.msra.mxu0 0.0
    %137 = vmatprep.subr.mxu0 0.0
    %138 = vmatpush1.msra.mxu0 0.0
    %139 = vmatprep.subr.mxu0 0.0
    %140 = vmatpush1.msra.mxu0 0.0
    %141 = vmatprep.subr.mxu0 0.0
    %142 = vmatpush1.msra.mxu0 0.0
    %143 = vmatprep.subr.mxu0 0.0
    %144 = vmatpush1.msra.mxu0 0.0
    %145 = vmatprep.subr.mxu0 0.0
    %146 = vmatpush1.msra.mxu0 0.0
    %147 = vmatprep.subr.mxu0 0.0
    %148 = vmatpush1.msra.mxu0 0.0
    %149 = vmatprep.subr.mxu0 0.0
    %150 = vmatpush1.msra.mxu0 0.0
    %151 = vmatprep.subr.mxu0 0.0
    %152 = vmatpush1.msra.mxu0 0.0
    %153 = vmatprep.subr.mxu0 0.0
    %154 = vmatpush1.msra.mxu0 0.0
    %155 = vmatprep.subr.mxu0 0.0
    %156 = vmatpush1.msra.mxu0 0.0
    %157 = vmatprep.subr.mxu0 0.0
    %158 = vmatpush1.msra.mxu0 0.0
    %159 = vmatprep.subr.mxu0 0.0
    %160 = vmatpush1.msra.mxu0 0.0
    %161 = vmatprep.subr.mxu0 0.0
    %162 = vmatpush1.msra.mxu0 0.0
    %163 = vmatprep.subr.mxu0 0.0
    %164 = vmatpush1.msra.mxu0 0.0
    %165 = vmatprep.subr.mxu0 0.0
    %166 = vmatpush1.msra.mxu0 0.0
    %167 = vmatprep.subr.mxu0 0.0
    %168 = vmatpush1.msra.mxu0 0.0
    %169 = vmatprep.subr.mxu0 0.0
    %170 = vmatpush1.msra.mxu0 0.0
    %171 = vmatprep.subr.mxu0 0.0
    %172 = vmatpush1.msra.mxu0 0.0
    %173 = vmatprep.subr.mxu0 0.0
    %174 = vmatpush1.msra.mxu0 0.0
    %175 = vmatprep.mubr.f32.mxu0 0.0
    %176 = vmatmul.mubr.f32.gmra.mrb[0].mxu0 %v106
    %v177 = vpop.f32.mrb[0].mxu0
    %v178 = vadd.f32 %v102, %v177
    %v179 = vpop.f32.mrb[0].mxu0
    %180 = vmatprep.mubr.f32.mxu0 0.0
    %181 = vmatmul.mubr.f32.gmra.mrb[0].mxu0 %v109
    %v182 = vpop.f32.mrb[0].mxu0
    %v183 = vadd.f32 %v102, %v182
    %v184 = vpop.f32.mrb[0].mxu0
    %185 = vdwg.mxu0
    %v186 = vmax.f32 %v178, 0.0
    %v187 = vmax.f32 %v183, 0.0
    %v188 = vld [vmem:[#allocation7] sm:$0xff]
    %v189 = vld [vmem:[#allocation7 + $0x8] sm:$0xff]
    %v190 = vld [vmem:[#allocation7 + $0x10] sm:$0xff]
    %v191 = vld [vmem:[#allocation7 + $0x18] sm:$0xff]
    %v192 = vld [vmem:[#allocation7 + $0x20] sm:$0xff]
    %v193 = vld [vmem:[#allocation7 + $0x28] sm:$0xff]
    %v194 = vld [vmem:[#allocation7 + $0x30] sm:$0xff]
    %v195 = vld [vmem:[#allocation7 + $0x38] sm:$0xff]
    %v196 = vld [vmem:[#allocation7 + $0x40] sm:$0xff]
    %v197 = vld [vmem:[#allocation7 + $0x48] sm:$0xff]
    %v198 = vld [vmem:[#allocation7 + $0x50] sm:$0xff]
    %v199 = vld [vmem:[#allocation7 + $0x58] sm:$0xff]
    %v200 = vld [vmem:[#allocation7 + $0x60] sm:$0xff]
    %v201 = vld [vmem:[#allocation7 + $0x68] sm:$0xff]
    %v202 = vld [vmem:[#allocation7 + $0x70] sm:$0xff]
    %v203 = vld [vmem:[#allocation7 + $0x78] sm:$0xff]
    %204 = vmatprep.subr.mxu0 0.0
    %205 = vmatpush1.msra.mxu0 %v188
    %206 = vmatprep.subr.mxu0 0.0
    %207 = vmatpush1.msra.mxu0 %v189
    %208 = vmatprep.subr.mxu0 0.0
    %209 = vmatpush1.msra.mxu0 %v190
    %210 = vmatprep.subr.mxu0 0.0
    %211 = vmatpush1.msra.mxu0 %v191
    %212 = vmatprep.subr.mxu0 0.0
    %213 = vmatpush1.msra.mxu0 %v192
    %214 = vmatprep.subr.mxu0 0.0
    %215 = vmatpush1.msra.mxu0 %v193
    %216 = vmatprep.subr.mxu0 0.0
    %217 = vmatpush1.msra.mxu0 %v194
    %218 = vmatprep.subr.mxu0 0.0
    %219 = vmatpush1.msra.mxu0 %v195
    %220 = vmatprep.subr.mxu0 0.0
    %221 = vmatpush1.msra.mxu0 %v196
    %222 = vmatprep.subr.mxu0 0.0
    %223 = vmatpush1.msra.mxu0 %v197
    %224 = vmatprep.subr.mxu0 0.0
    %225 = vmatpush1.msra.mxu0 %v198
    %226 = vmatprep.subr.mxu0 0.0
    %227 = vmatpush1.msra.mxu0 %v199
    %228 = vmatprep.subr.mxu0 0.0
    %229 = vmatpush1.msra.mxu0 %v200
    %230 = vmatprep.subr.mxu0 0.0
    %231 = vmatpush1.msra.mxu0 %v201
    %232 = vmatprep.subr.mxu0 0.0
    %233 = vmatpush1.msra.mxu0 %v202
    %234 = vmatprep.subr.mxu0 0.0
    %235 = vmatpush1.msra.mxu0 %v203
    %236 = vmatprep.subr.mxu0 0.0
    %237 = vmatpush1.msra.mxu0 0.0
    %238 = vmatprep.subr.mxu0 0.0
    %239 = vmatpush1.msra.mxu0 0.0
    %240 = vmatprep.subr.mxu0 0.0
    %241 = vmatpush1.msra.mxu0 0.0
    %242 = vmatprep.subr.mxu0 0.0
    %243 = vmatpush1.msra.mxu0 0.0
    %244 = vmatprep.subr.mxu0 0.0
    %245 = vmatpush1.msra.mxu0 0.0
    %246 = vmatprep.subr.mxu0 0.0
    %247 = vmatpush1.msra.mxu0 0.0
    %248 = vmatprep.subr.mxu0 0.0
    %249 = vmatpush1.msra.mxu0 0.0
    %250 = vmatprep.subr.mxu0 0.0
    %251 = vmatpush1.msra.mxu0 0.0
    %252 = vmatprep.subr.mxu0 0.0
    %253 = vmatpush1.msra.mxu0 0.0
    %254 = vmatprep.subr.mxu0 0.0
    %255 = vmatpush1.msra.mxu0 0.0
    %256 = vmatprep.subr.mxu0 0.0
    %257 = vmatpush1.msra.mxu0 0.0
    %258 = vmatprep.subr.mxu0 0.0
    %259 = vmatpush1.msra.mxu0 0.0
    %260 = vmatprep.subr.mxu0 0.0
    %261 = vmatpush1.msra.mxu0 0.0
    %262 = vmatprep.subr.mxu0 0.0
    %263 = vmatpush1.msra.mxu0 0.0
    %264 = vmatprep.subr.mxu0 0.0
    %265 = vmatpush1.msra.mxu0 0.0
    %266 = vmatprep.subr.mxu0 0.0
    %267 = vmatpush1.msra.mxu0 0.0
    %268 = vmatprep.mubr.f32.mxu0 0.0
    %269 = vmatmul.mubr.f32.gmra.mrb[0].mxu0 %v186
    %v270 = vpop.f32.mrb[0].mxu0
    %v271 = vadd.f32 0.0, %v270
    %v272 = vpop.f32.mrb[0].mxu0
    %273 = vmatprep.mubr.f32.mxu0 0.0
    %274 = vmatmul.mubr.f32.gmra.mrb[0].mxu0 %v187
    %v275 = vpop.f32.mrb[0].mxu0
    %v276 = vadd.f32 0.0, %v275
    %v277 = vpop.f32.mrb[0].mxu0
    %278 = vdwg.mxu0
    %v279 = vsub.f32 %v186, %v271
    %v280 = vsub.f32 %v187, %v276
    %v281 = vmul.f32 %v279, %v279
    %v282 = vmul.f32 %v280, %v280
    %283 = vmatprep.subr.mxu0 0.0
    %284 = vmatpush1.msra.mxu0 %v188
    %285 = vmatprep.subr.mxu0 0.0
    %286 = vmatpush1.msra.mxu0 %v189
    %287 = vmatprep.subr.mxu0 0.0
    %288 = vmatpush1.msra.mxu0 %v190
    %289 = vmatprep.subr.mxu0 0.0
    %290 = vmatpush1.msra.mxu0 %v191
    %291 = vmatprep.subr.mxu0 0.0
    %292 = vmatpush1.msra.mxu0 %v192
    %293 = vmatprep.subr.mxu0 0.0
    %294 = vmatpush1.msra.mxu0 %v193
    %295 = vmatprep.subr.mxu0 0.0
    %296 = vmatpush1.msra.mxu0 %v194
    %297 = vmatprep.subr.mxu0 0.0
    %298 = vmatpush1.msra.mxu0 %v195
    %299 = vmatprep.subr.mxu0 0.0
    %300 = vmatpush1.msra.mxu0 %v196
    %301 = vmatprep.subr.mxu0 0.0
    %302 = vmatpush1.msra.mxu0 %v197
    %303 = vmatprep.subr.mxu0 0.0
    %304 = vmatpush1.msra.mxu0 %v198
    %305 = vmatprep.subr.mxu0 0.0
    %306 = vmatpush1.msra.mxu0 %v199
    %307 = vmatprep.subr.mxu0 0.0
    %308 = vmatpush1.msra.mxu0 %v200
    %309 = vmatprep.subr.mxu0 0.0
    %310 = vmatpush1.msra.mxu0 %v201
    %311 = vmatprep.subr.mxu0 0.0
    %312 = vmatpush1.msra.mxu0 %v202
    %313 = vmatprep.subr.mxu0 0.0
    %314 = vmatpush1.msra.mxu0 %v203
    %315 = vmatprep.subr.mxu0 0.0
    %316 = vmatpush1.msra.mxu0 0.0
    %317 = vmatprep.subr.mxu0 0.0
    %318 = vmatpush1.msra.mxu0 0.0
    %319 = vmatprep.subr.mxu0 0.0
    %320 = vmatpush1.msra.mxu0 0.0
    %321 = vmatprep.subr.mxu0 0.0
    %322 = vmatpush1.msra.mxu0 0.0
    %323 = vmatprep.subr.mxu0 0.0
    %324 = vmatpush1.msra.mxu0 0.0
    %325 = vmatprep.subr.mxu0 0.0
    %326 = vmatpush1.msra.mxu0 0.0
    %327 = vmatprep.subr.mxu0 0.0
    %328 = vmatpush1.msra.mxu0 0.0
    %329 = vmatprep.subr.mxu0 0.0
    %330 = vmatpush1.msra.mxu0 0.0
    %331 = vmatprep.subr.mxu0 0.0
    %332 = vmatpush1.msra.mxu0 0.0
    %333 = vmatprep.subr.mxu0 0.0
    %334 = vmatpush1.msra.mxu0 0.0
    %335 = vmatprep.subr.mxu0 0.0
    %336 = vmatpush1.msra.mxu0 0.0
    %337 = vmatprep.subr.mxu0 0.0
    %338 = vmatpush1.msra.mxu0 0.0
    %339 = vmatprep.subr.mxu0 0.0
    %340 = vmatpush1.msra.mxu0 0.0
    %341 = vmatprep.subr.mxu0 0.0
    %342 = vmatpush1.msra.mxu0 0.0
    %343 = vmatprep.subr.mxu0 0.0
    %344 = vmatpush1.msra.mxu0 0.0
    %345 = vmatprep.subr.mxu0 0.0
    %346 = vmatpush1.msra.mxu0 0.0
    %347 = vmatprep.mubr.f32.mxu0 0.0
    %348 = vmatmul.mubr.f32.gmra.mrb[0].mxu0 %v281
    %v349 = vpop.f32.mrb[0].mxu0
    %v350 = vadd.f32 1e-05, %v349
    %v351 = vpop.f32.mrb[0].mxu0
    %352 = vmatprep.mubr.f32.mxu0 0.0
    %353 = vmatmul.mubr.f32.gmra.mrb[0].mxu0 %v282
    %v354 = vpop.f32.mrb[0].mxu0
    %v355 = vadd.f32 1e-05, %v354
    %v356 = vpop.f32.mrb[0].mxu0
    %357 = vdwg.mxu0
    %v358 = vrsqrt.pop %v350
    %v359 = vrsqrt.pop %v355
    %v360 = vmul.f32 %v279, %v358
    %v361 = vmul.f32 %v280, %v359
    %v362 = vld [vmem:[%s5] sm:$0x1]
    %v364 = vlaneseq
    %v365 = vshrl.u32 %v364, 7
    %v366 = vsub.s32 0, %v365
    %v367 = vrot.slane %v362, %v366
    %v369 = vmul.f32 %v360, %v367
    %v370 = vmul.f32 %v361, %v367
    %v371 = vld [vmem:[%s6] sm:$0x1]
    %v373 = vlaneseq
    %v374 = vshrl.u32 %v373, 7
    %v375 = vsub.s32 0, %v374
    %v376 = vrot.slane %v371, %v375
    %v378 = vadd.f32 %v369, %v376
    %v379 = vadd.f32 %v370, %v376
    %380 = vst [vmem:[#allocation8] sm:$0xff] %v378
    %381 = vst [vmem:[#allocation8 + $0x8] sm:$0xff] %v379
    // Predicated region
    $region46: #{tpu_custom_call.1} parent=1 // pred_check
      _
    $region47: #{tpu_custom_call.1} parent=1 // pred_check_branch
      %383 = sbr.rel (0) target = $region49
    $region48: #{tpu_custom_call.1} parent=1 // pred_region
      %s385 = ssub.s32 256, 256
      %386 = vsyncadd [#allocation4], %s385
      %s387 = sshll.u32 [#allocation8], 4
      %s388 = int_to_ptr.vmem [resolvable:$true] %s387
      %393 = dma.vmem_to_hbm [thread:$0]  %s388, 256, %s8, [#allocation4], 128, 128, 8
    $region49: #{tpu_custom_call.1} parent=1 // pred_fallthru
      _
    // Predicated region
    $region50: #{tpu_custom_call.1} parent=1 // pred_check
      _
    $region51: #{tpu_custom_call.1} parent=1 // pred_check_branch
      %395 = sbr.rel (0) target = $region53
    $region52: #{tpu_custom_call.1} parent=1 // pred_region
      %396 = dma.done [#allocation4], 256
    $region53: #{tpu_custom_call.1} parent=1 // pred_fallthru
      _
    %397 = vsyncpa [#allocation3], 1
    %398 = vsyncpa [#allocation6], 1
    %399 = vsyncpa [#allocation4], 1

</llo_original>
